<compile_context>
chip_gen: v5e
topology: v5e:2x2
jax: 0.10.0
libtpu: 0.0.40
codegen_flags: <defaults>
</compile_context>

<pallas_src>
import functools

import jax
import jax.numpy as jnp
from jax.experimental import pallas as pl
from jax.experimental.pallas import tpu as pltpu


def _round_up(x, m):
    return ((x + m - 1) // m) * m


def _round_down(x, m):
    return (x // m) * m


# ----------------------------------------------------------------------------
# Generation-aware VMEM budgets.
# ----------------------------------------------------------------------------
def _vmem_capacity_bytes():
    try:
        return int(pltpu.get_tpu_info().vmem_capacity_bytes)
    except Exception:
        return 64 * 1024 * 1024  # conservative fallback (v7x per-core VMEM)


def _generation_budgets():
    cap = _vmem_capacity_bytes()
    if cap >= 96 * 1024 * 1024:
        # v5e / v6e: 128 MiB physical VMEM -> big tiles, fewer grid steps.
        return dict(tile_budget=80 * 2**20, vmem_limit=100 * 2**20,
                    block_m=1024, block_n=512)
    # v7x-class: 64 MiB per TensorCore -> leave headroom for Mosaic scratch.
    return dict(tile_budget=36 * 2**20, vmem_limit=56 * 2**20,
                block_m=512, block_n=256)


# ----------------------------------------------------------------------------
# One-time probe: is BlockSpec(pipeline_mode=pl.Buffered(n)) usable here?
# (Keeps the kernel runnable even if this JAX build rejects it.)
# ----------------------------------------------------------------------------
_PIPELINE_MODE_OK = None


def _pipeline_mode_supported():
    global _PIPELINE_MODE_OK
    if _PIPELINE_MODE_OK is None:
        try:
            def _probe(x_ref, o_ref):
                o_ref[...] = x_ref[...] * 2.0

            fn = pl.pallas_call(
                _probe,
                out_shape=jax.ShapeDtypeStruct((8, 128), jnp.float32),
                grid=(2,),
                in_specs=[pl.BlockSpec((8, 128), lambda i: (0, 0),
                                       pipeline_mode=pl.Buffered(1))],
                out_specs=pl.BlockSpec((8, 128), lambda i: (0, 0)),
            )
            out = jax.block_until_ready(fn(jnp.ones((8, 128), jnp.float32)))
            _PIPELINE_MODE_OK = bool(jnp.allclose(out, 2.0))
        except Exception:
            _PIPELINE_MODE_OK = False
    return _PIPELINE_MODE_OK


# ----------------------------------------------------------------------------
# Kernel.
# ----------------------------------------------------------------------------
def _make_kernel(has_bias: bool):
    def kernel(*refs):
        if has_bias:
            x_ref, w0_ref, w1_ref, b_ref, o_ref, h_ref = refs
        else:
            x_ref, w0_ref, w1_ref, o_ref, h_ref = refs
            b_ref = None

        j = pl.program_id(1)

        # First (low-rank) matmul: once per M tile, f32 accumulation on the
        # MXU, stored at h_ref.dtype (bf16 fast path pays the cast only once).
        @pl.when(j == 0)
        def _():
            h_ref[...] = jnp.dot(
                x_ref[...], w0_ref[...],
                preferred_element_type=jnp.float32).astype(h_ref.dtype)

        h = h_ref[...]
        w1 = w1_ref[...]
        if w1.dtype != h.dtype:
            # Mixed-dtype case: h is f32 by construction; keep the f32 path.
            w1 = w1.astype(h.dtype)
        y = jnp.dot(h, w1, preferred_element_type=jnp.float32)

        if b_ref is not None:
            y = y + b_ref[...].astype(jnp.float32)
        o_ref[...] = y.astype(o_ref.dtype)

    return kernel


# ----------------------------------------------------------------------------
# Wrapper.
# ----------------------------------------------------------------------------
@functools.partial(
    jax.jit, static_argnames=("block_m", "block_n", "use_pipeline_mode"))
def _low_rank_linear_impl(x, w0, w1, bias, *, block_m, block_n,
                          use_pipeline_mode):
    M, in_f = x.shape
    rank = w0.shape[1]
    out_f = w1.shape[1]
    assert w0.shape == (in_f, rank) and w1.shape == (rank, out_f)
    if bias is not None:
        assert bias.shape == (out_f,)

    out_dtype = x.dtype
    budgets = _generation_budgets()
    if block_m is None:
        block_m = budgets["block_m"]
    if block_n is None:
        block_n = budgets["block_n"]
    tile_budget = budgets["tile_budget"]
    vmem_limit = budgets["vmem_limit"]

    # bf16 fast path only when both second-matmul operands are natively bf16;
    # otherwise keep the f32 intermediate (PyTorch f32 numerical parity).
    h_dtype = (jnp.bfloat16
               if (x.dtype == jnp.bfloat16 and w1.dtype == jnp.bfloat16)
               else jnp.float32)

    # ---- N (out_features) tiling: lane-dense 128-multiple tiles; the last
    # block may be ragged (OOB writes are dropped) -> no padding / post-slice.
    tn = min(block_n, _round_up(out_f, 128))
    tn = _round_up(tn, 128)
    grid_n = pl.cdiv(out_f, tn)

    # ---- VMEM accounting (lane/sublane-padding aware). ----------------------
    xb = x.dtype.itemsize
    w0b = w0.dtype.itemsize
    w1b = w1.dtype.itemsize
    ob = jnp.dtype(out_dtype).itemsize
    hb = jnp.dtype(h_dtype).itemsize
    rank_l = _round_up(rank, 128)   # lane padding where rank is the minor dim
    rank_s = _round_up(rank, 8)     # sublane padding where rank is the major dim

    w0_buffers = 1 if use_pipeline_mode else 2
    fixed = w0_buffers * _round_up(in_f, 8) * rank_l * w0b     # w0 block(s)
    fixed += 2 * rank_s * tn * w1b                              # w1 (double buf)
    if bias is not None:
        fixed += 2 * 8 * tn * bias.dtype.itemsize               # bias (double buf)

    x_row = _round_up(in_f, 128) * xb          # per output row, per x buffer
    other_row = 2 * tn * ob + rank_l * hb      # y double buffer + h scratch

    def _tm_cap(x_buffers):
        per_row = x_buffers * x_row + other_row
        return max(8, (tile_budget - fixed) // per_row)

    # Triple-buffer x (prefetch the next M tile two j-steps early) only when
    # it is free: >= 3 N tiles to hide behind and it does not shrink the tile.
    x_buffers = 2
    if use_pipeline_mode and grid_n >= 3 and _tm_cap(3) >= min(block_m, max(M, 8)):
        x_buffers = 3

    # ---- M tiling: as large as the budget allows; 8-row alignment only
    # (memory-bound kernel -> no 256-multiple MXU rounding).
    tm = min(block_m, _tm_cap(x_buffers))
    if M <= tm:
        tm = M                                  # full extent is always legal
    else:
        tm = max(8, _round_down(tm, 8))
    grid_m = pl.cdiv(M, tm)

    # Keep both TensorCores of a megacore part (v7x) busy when M is big enough.
    if grid_m == 1 and M > 512:
        tm = _round_up(pl.cdiv(M, 2), 8)
        grid_m = pl.cdiv(M, tm)

    # ---- BlockSpecs. ---------------------------------------------------------
    if x_buffers == 3:
        x_spec = pl.BlockSpec((tm, in_f), lambda i, j: (i, 0),
                              pipeline_mode=pl.Buffered(3))
    else:
        x_spec = pl.BlockSpec((tm, in_f), lambda i, j: (i, 0))
    if use_pipeline_mode:
        # Constant block index -> single buffer halves w0's VMEM footprint.
        w0_spec = pl.BlockSpec((in_f, rank), lambda i, j: (0, 0),
                               pipeline_mode=pl.Buffered(1))
    else:
        w0_spec = pl.BlockSpec((in_f, rank), lambda i, j: (0, 0))
    w1_spec = pl.BlockSpec((rank, tn), lambda i, j: (0, j))
    o_spec = pl.BlockSpec((tm, tn), lambda i, j: (i, j))

    in_specs = [x_spec, w0_spec, w1_spec]
    args = [x, w0, w1]
    if bias is not None:
        in_specs.append(pl.BlockSpec((1, tn), lambda i, j: (0, j)))
        args.append(bias.reshape(1, out_f))

    # Advisory cost estimate for the XLA scheduler.
    flops = 2 * M * in_f * rank + 2 * M * rank * out_f
    if bias is not None:
        flops += M * out_f
    bytes_accessed = (M * in_f * xb
                      + in_f * rank * w0b
                      + grid_m * rank * out_f * w1b
                      + (grid_m * out_f * bias.dtype.itemsize
                         if bias is not None else 0)
                      + M * out_f * ob)
    cost = pl.CostEstimate(flops=flops, transcendentals=0,
                           bytes_accessed=bytes_accessed)

    return pl.pallas_call(
        _make_kernel(bias is not None),
        out_shape=jax.ShapeDtypeStruct((M, out_f), out_dtype),
        grid_spec=pltpu.PrefetchScalarGridSpec(
            num_scalar_prefetch=0,
            grid=(grid_m, grid_n),
            in_specs=in_specs,
            out_specs=o_spec,
            scratch_shapes=[pltpu.VMEM((tm, rank), h_dtype)],
        ),
        compiler_params=pltpu.CompilerParams(
            dimension_semantics=("parallel", "arbitrary"),
            vmem_limit_bytes=vmem_limit,
        ),
        cost_estimate=cost,
    )(*args)


def low_rank_linear(x, w0, w1, bias=None, *, block_m=None, block_n=None):
    """y = (x @ w0) @ w1 [+ bias]  — LowRankLinear.forward, fused in one kernel."""
    lead = x.shape[:-1]
    x2 = x.reshape(-1, x.shape[-1])
    y = _low_rank_linear_impl(
        x2, w0, w1, bias,
        block_m=block_m, block_n=block_n,
        use_pipeline_mode=_pipeline_mode_supported())
    return y.reshape(*lead, y.shape[-1])


# ----------------------------------------------------------------------------
# Self-test.
# ----------------------------------------------------------------------------
if __name__ == "__main__":
    def _ref(x, w0, w1, bias=None):
        hi = jax.lax.Precision.HIGHEST
        y = jnp.dot(jnp.dot(x, w0, precision=hi), w1, precision=hi)
        if bias is not None:
            y = y + bias
        return y

    # Deterministic parameter + input init (mirrors torch.randn in __init__).
    in_features, out_features, rank = 32, 64, 16
    batch = 8
    key = jax.random.PRNGKey(0)
    k_x, k_w0, k_w1, k_b = jax.random.split(key, 4)
    x = jax.random.normal(k_x, (batch, in_features), dtype=jnp.float32)
    w0 = jax.random.normal(k_w0, (in_features, rank), dtype=jnp.float32)
    w1 = jax.random.normal(k_w1, (rank, out_features), dtype=jnp.float32)
    bias = jax.random.normal(k_b, (out_features,), dtype=jnp.float32)

    # Bias path (ragged N block: out_features < 128, no padding / slice).
    y = jax.block_until_ready(low_rank_linear(x, w0, w1, bias))
    assert y.shape == (batch, out_features)
    assert jnp.allclose(y, _ref(x, w0, w1, bias), atol=5e-3, rtol=5e-3), \
        "bias path mismatch vs reference"

    # No-bias path.
    y_nb = jax.block_until_ready(low_rank_linear(x, w0, w1, None))
    assert jnp.allclose(y_nb, _ref(x, w0, w1, None), atol=5e-3, rtol=5e-3), \
        "no-bias path mismatch vs reference"

    # Multi-tile path: grid over both M and out_features, partial last M block,
    # ragged last N block (320 % 128 != 0), h-scratch reuse across N tiles.
    M2, in2, out2, r2 = 272, 160, 320, 16
    k1, k2, k3, k4 = jax.random.split(jax.random.PRNGKey(1), 4)
    x2 = jax.random.normal(k1, (M2, in2), dtype=jnp.float32)
    w02 = jax.random.normal(k2, (in2, r2), dtype=jnp.float32)
    w12 = jax.random.normal(k3, (r2, out2), dtype=jnp.float32)
    b2 = jax.random.normal(k4, (out2,), dtype=jnp.float32)
    y2 = jax.block_until_ready(
        low_rank_linear(x2, w02, w12, b2, block_m=128, block_n=128))
    assert y2.shape == (M2, out2)
    assert jnp.allclose(y2, _ref(x2, w02, w12, b2), atol=2e-2, rtol=1e-2), \
        "tiled path mismatch vs reference"

    # Megacore-split path: M > 512 forces at least two M tiles.
    M3 = 600
    x3 = jax.random.normal(jax.random.PRNGKey(2), (M3, in_features),
                           dtype=jnp.float32)
    y3 = jax.block_until_ready(low_rank_linear(x3, w0, w1, bias))
    assert y3.shape == (M3, out_features)
    assert jnp.allclose(y3, _ref(x3, w0, w1, bias), atol=2e-2, rtol=1e-2), \
        "megacore-split path mismatch vs reference"

    # bf16 fast path (h cached in bf16 once, bf16 MXU second matmul).
    xb_, w0b_ = x.astype(jnp.bfloat16), w0.astype(jnp.bfloat16)
    w1b_, bb_ = w1.astype(jnp.bfloat16), bias.astype(jnp.bfloat16)
    yb = jax.block_until_ready(low_rank_linear(xb_, w0b_, w1b_, bb_))
    assert yb.dtype == jnp.bfloat16 and yb.shape == (batch, out_features)
    ref_b = _ref(xb_.astype(jnp.float32), w0b_.astype(jnp.float32),
                 w1b_.astype(jnp.float32), bb_.astype(jnp.float32))
    assert jnp.allclose(yb.astype(jnp.float32), ref_b, atol=1.0, rtol=5e-2), \
        "bf16 path mismatch vs reference"

    print("KERNEL_OK")
</pallas_src>

<mosaic_0001>
module attributes {stable_mosaic.version = 11 : i64} {
  func.func @_probe(%arg0: i32, %arg1: memref<8x128xf32, #tpu.memory_space<vmem>>, %arg2: memref<8x128xf32, #tpu.memory_space<vmem>>) attributes {dimension_semantics = [#tpu.dimension_semantics<arbitrary>], iteration_bounds = array<i64: 2>, scalar_prefetch = 0 : i64, scratch_operands = 0 : i64, tpu.core_type = #tpu.core_type<tc>, window_params = [{pipeline_mode = #tpu.pipeline_mode<synchronous>, transform_indices = @transform_0, window_bounds = array<i64: 8, 128>}, {pipeline_mode = #tpu.pipeline_mode<synchronous>, transform_indices = @transform_1, window_bounds = array<i64: 8, 128>}]} {
    %c0 = arith.constant 0 : index
    %c0_0 = arith.constant 0 : index
    %0 = vector.load %arg1[%c0, %c0_0] : memref<8x128xf32, #tpu.memory_space<vmem>>, vector<8x128xf32>
    %cst = arith.constant 2.000000e+00 : f32
    %1 = vector.broadcast %cst : f32 to vector<8x128xf32>
    %2 = arith.mulf %0, %1 : vector<8x128xf32>
    %c0_1 = arith.constant 0 : index
    %c0_2 = arith.constant 0 : index
    %3 = vector.load %arg2[%c0_1, %c0_2] : memref<8x128xf32, #tpu.memory_space<vmem>>, vector<8x128xf32>
    tpu.vector_store %arg2[%c0_1, %c0_2], %2 {strides = array<i32>} : memref<8x128xf32, #tpu.memory_space<vmem>>, vector<8x128xf32>,
    return
  }
  func.func @transform_0(%arg0: i32) -> (i32, i32) {
    %c0_i32 = arith.constant 0 : i32
    %c0_i32_0 = arith.constant 0 : i32
    %c0_i32_1 = arith.constant 0 : i32
    return %c0_i32, %c0_i32_0 : i32, i32
  }
  func.func @transform_1(%arg0: i32) -> (i32, i32) {
    %c0_i32 = arith.constant 0 : i32
    %c0_i32_0 = arith.constant 0 : i32
    %c0_i32_1 = arith.constant 0 : i32
    return %c0_i32, %c0_i32_0 : i32, i32
  }
}

module attributes {stable_mosaic.version = 11 : i64} {
  func.func @kernel(%arg0: i32, %arg1: i32, %arg2: memref<8x32xf32, #tpu.memory_space<vmem>>, %arg3: memref<32x16xf32, #tpu.memory_space<vmem>>, %arg4: memref<16x128xf32, #tpu.memory_space<vmem>>, %arg5: memref<1x128xf32, #tpu.memory_space<vmem>>, %arg6: memref<8x128xf32, #tpu.memory_space<vmem>>, %arg7: memref<8x16xf32, #tpu.memory_space<vmem>>) attributes {dimension_semantics = [#tpu.dimension_semantics<parallel>, #tpu.dimension_semantics<arbitrary>], iteration_bounds = array<i64: 1, 1>, scalar_prefetch = 0 : i64, scratch_operands = 1 : i64, tpu.core_type = #tpu.core_type<tc>, window_params = [{transform_indices = @transform_0, window_bounds = array<i64: 8, 32>}, {pipeline_mode = #tpu.pipeline_mode<synchronous>, transform_indices = @transform_1, window_bounds = array<i64: 32, 16>}, {transform_indices = @transform_2, window_bounds = array<i64: 16, 128>}, {transform_indices = @transform_3, window_bounds = array<i64: 1, 128>}, {transform_indices = @transform_4, window_bounds = array<i64: 8, 128>}]} {
    %c0_i32 = arith.constant 0 : i32
    %0 = arith.cmpi eq, %arg1, %c0_i32 : i32
    %1 = arith.extui %0 : i1 to i32
    %c0_i32_0 = arith.constant 0 : i32
    %2 = arith.cmpi ne, %1, %c0_i32_0 : i32
    scf.if %2 {
      %c0_8 = arith.constant 0 : index
      %c0_9 = arith.constant 0 : index
      %10 = vector.load %arg2[%c0_8, %c0_9] : memref<8x32xf32, #tpu.memory_space<vmem>>, vector<8x32xf32>
      %c0_10 = arith.constant 0 : index
      %c0_11 = arith.constant 0 : index
      %11 = vector.load %arg3[%c0_10, %c0_11] : memref<32x16xf32, #tpu.memory_space<vmem>>, vector<32x16xf32>
      %cst_12 = arith.constant dense<0.000000e+00> : vector<8x16xf32>
      %12 = tpu.matmul %10, %11, %cst_12 {dimension_numbers = #tpu.dot_dimension_numbers<[1], [0], [0], [1], [0, 0, 1, 1], [], []>} : vector<8x32xf32>, vector<32x16xf32>, vector<8x16xf32> -> vector<8x16xf32>
      %c0_13 = arith.constant 0 : index
      %c0_14 = arith.constant 0 : index
      %13 = vector.load %arg7[%c0_13, %c0_14] : memref<8x16xf32, #tpu.memory_space<vmem>>, vector<8x16xf32>
      tpu.vector_store %arg7[%c0_13, %c0_14], %12 {strides = array<i32>} : memref<8x16xf32, #tpu.memory_space<vmem>>, vector<8x16xf32>,
    } else {
    }
    %c0 = arith.constant 0 : index
    %c0_1 = arith.constant 0 : index
    %3 = vector.load %arg7[%c0, %c0_1] : memref<8x16xf32, #tpu.memory_space<vmem>>, vector<8x16xf32>
    %c0_2 = arith.constant 0 : index
    %c0_3 = arith.constant 0 : index
    %4 = vector.load %arg4[%c0_2, %c0_3] : memref<16x128xf32, #tpu.memory_space<vmem>>, vector<16x128xf32>
    %cst = arith.constant dense<0.000000e+00> : vector<8x128xf32>
    %5 = tpu.matmul %3, %4, %cst {dimension_numbers = #tpu.dot_dimension_numbers<[1], [0], [0], [1], [0, 0, 1, 1], [], []>} : vector<8x16xf32>, vector<16x128xf32>, vector<8x128xf32> -> vector<8x128xf32>
    %c0_4 = arith.constant 0 : index
    %c0_5 = arith.constant 0 : index
    %6 = vector.load %arg5[%c0_4, %c0_5] : memref<1x128xf32, #tpu.memory_space<vmem>>, vector<1x128xf32>
    %7 = vector.broadcast %6 : vector<1x128xf32> to vector<8x128xf32>
    %8 = arith.addf %5, %7 : vector<8x128xf32>
    %c0_6 = arith.constant 0 : index
    %c0_7 = arith.constant 0 : index
    %9 = vector.load %arg6[%c0_6, %c0_7] : memref<8x128xf32, #tpu.memory_space<vmem>>, vector<8x128xf32>
    tpu.vector_store %arg6[%c0_6, %c0_7], %8 {strides = array<i32>} : memref<8x128xf32, #tpu.memory_space<vmem>>, vector<8x128xf32>,
    return
  }
  func.func @transform_0(%arg0: i32, %arg1: i32) -> (i32, i32) {
    %c0_i32 = arith.constant 0 : i32
    %c0_i32_0 = arith.constant 0 : i32
    return %arg0, %c0_i32 : i32, i32
  }
  func.func @transform_1(%arg0: i32, %arg1: i32) -> (i32, i32) {
    %c0_i32 = arith.constant 0 : i32
    %c0_i32_0 = arith.constant 0 : i32
    %c0_i32_1 = arith.constant 0 : i32
    return %c0_i32, %c0_i32_0 : i32, i32
  }
  func.func @transform_2(%arg0: i32, %arg1: i32) -> (i32, i32) {
    %c0_i32 = arith.constant 0 : i32
    %c0_i32_0 = arith.constant 0 : i32
    return %c0_i32, %arg1 : i32, i32
  }
  func.func @transform_3(%arg0: i32, %arg1: i32) -> (i32, i32) {
    %c0_i32 = arith.constant 0 : i32
    %c0_i32_0 = arith.constant 0 : i32
    return %c0_i32, %arg1 : i32, i32
  }
  func.func @transform_4(%arg0: i32, %arg1: i32) -> (i32, i32) {
    %c0_i32 = arith.constant 0 : i32
    return %arg0, %arg1 : i32, i32
  }
}

</mosaic_0001>

<llo_original>
// kernel: tpu_custom_call.1
$region0: #{tpu_custom_call.1}
  #allocation0 [shape = 'u32[]', space=smem, size = 0x4, offset = 0x4, fixed_abs, tag = 'smem constant byte address 0x4 - core index']
  #allocation1 [shape = 'u32[72,128]{1,0:T(1,128)}', space=vmem, size = 0x9000, scoped, tag = 'internal scratch']
  %s0 = inlined_call_operand.hbm [shape: f32[8,128], index: 0, kind: input, shape index: {}]
  %s1 = inlined_call_operand.hbm [shape: f32[8,128], index: 1, kind: output, shape index: {}]
  %s2 = sld [smem:[#allocation0]]
  $region41: #{tpu_custom_call.1} parent=0
    _
  %s4 = ssub.s32 1, %s2
  %s5 = scalar_select 0, %s4, %s2
  $region1: #{tpu_custom_call.1} parent=0
    #allocation2 [shape = 'u8[4096]{0}', space=vmem, size = 0x1000, scoped, tag = 'input window, operand 0, single buffered']
    #allocation3 [shape = 's32[2]{0}', space=sflag, size = 0x8, scoped, tag = 'scoped memory for tpu_custom_call.1']
    #allocation4 [shape = 's32[2]{0}', space=sflag, size = 0x8, scoped, tag = 'scoped memory for tpu_custom_call.1']
    #allocation5 [shape = 'u8[4096]{0}', space=vmem, size = 0x1000, scoped, tag = 'output window, operand 0, single buffered']
    %6 = vsyncpa [#allocation3], 0
    %7 = vsyncpa [#allocation4], 0
    loop: start=0, step=1, limit=4
    $region2: #{tpu_custom_call.1} parent=1 // loop_pre_header
      _
    $region3: #{tpu_custom_call.1} parent=1 // loop_header
      %s9 = sphi 0, %s13
      %p10 = scmp.ge.s32.totalorder %s9, 4
      %s17 = sphi 0, %s17
      %s19 = sphi 0, %s17
      %s20 = sphi 0, %s19
      %s34 = sphi 0, %s20
      %s38 = sphi 0, %s38
      %s40 = sphi 0, %s38
      %s41 = sphi 0, %s40
      %s55 = sphi 0, %s41
    $region4: #{tpu_custom_call.1} parent=1 // loop_header_branch
      %12 = sbr.rel (%p10) target = $region8
    $region5: #{tpu_custom_call.1} parent=1 // loop_body
      %s14 = ssub.s32 %s9, 1
      %s15 = ssub.s32 %s9, 2
      %s16 = sadd.s32 %s9, 1
      %s18 = sadd.s32 %s17, 1
      %p21 = scmp.eq.s32.totalorder %s9, 1
      %p22 = scmp.ne.s32.totalorder %s17, %s19
      %p23 = scmp.eq.s32.totalorder %s9, 0
      %p24 = por %p22, %p23
      %p25 = scmp.ne.s32.totalorder %s17, %s19
      %p26 = scmp.eq.s32.totalorder %s14, 1
      %p27 = por %p25, %p26
      %p28 = scmp.ne.s32.totalorder %s19, %s20
      %p29 = scmp.eq.s32.totalorder %s14, 0
      %p30 = por %p28, %p29
      %p31 = scmp.ne.s32.totalorder %s19, %s20
      %p32 = scmp.eq.s32.totalorder %s15, 1
      %p33 = por %p31, %p32
      %p35 = scmp.ne.s32.totalorder %s20, %s34
      %p36 = scmp.eq.s32.totalorder %s15, 0
      %p37 = por %p35, %p36
      %s39 = sadd.s32 %s38, 1
      %p42 = scmp.eq.s32.totalorder %s9, 1
      %p43 = scmp.ne.s32.totalorder %s38, %s40
      %p44 = scmp.eq.s32.totalorder %s9, 0
      %p45 = por %p43, %p44
      %p46 = scmp.ne.s32.totalorder %s38, %s40
      %p47 = scmp.eq.s32.totalorder %s14, 1
      %p48 = por %p46, %p47
      %p49 = scmp.ne.s32.totalorder %s40, %s41
      %p50 = scmp.eq.s32.totalorder %s14, 0
      %p51 = por %p49, %p50
      %p52 = scmp.ne.s32.totalorder %s40, %s41
      %p53 = scmp.eq.s32.totalorder %s15, 1
      %p54 = por %p52, %p53
      %p56 = scmp.ne.s32.totalorder %s41, %s55
      %p57 = scmp.eq.s32.totalorder %s15, 0
      %p58 = por %p56, %p57
      %p59 = scmp.le.s32.totalorder 1, %s9
      %p60 = scmp.lt.s32.totalorder %s9, 3
      %p61 = pnand %p59, %p60
      %p62 = pneg %p61
      // Predicated region
      $region9: #{tpu_custom_call.1} parent=5 // pred_check
        _
      $region10: #{tpu_custom_call.1} parent=5 // pred_check_branch
        %64 = sbr.rel (%p61) target = $region12
      $region11: #{tpu_custom_call.1} parent=5 // pred_region
        %s65 = ssub.s32 %s9, 1
        // Predicated region
        $region13: #{tpu_custom_call.1} parent=11 // pred_check
          %p66 = pneg %p30
        $region14: #{tpu_custom_call.1} parent=11 // pred_check_branch
          %68 = sbr.rel (%p66) target = $region16
        $region15: #{tpu_custom_call.1} parent=11 // pred_region
          %70 = vsyncadd [#allocation3], 0
          %s72 = sshll.u32 %s0, 4
          %s73 = int_to_ptr.hbm [resolvable:$true] %s72
          %s74 = sshll.u32 [#allocation2], 4
          %s75 = int_to_ptr.vmem [resolvable:$true] %s74
          %77 = dma.hbm_to_vmem [thread:$0]  %s73, 128, %s75, [#allocation3]
        $region16: #{tpu_custom_call.1} parent=11 // pred_fallthru
          _
      $region12: #{tpu_custom_call.1} parent=5 // pred_fallthru
        _
      %p78 = scmp.lt.s32.totalorder %s9, 2
      // Predicated region
      $region17: #{tpu_custom_call.1} parent=5 // pred_check
        %p79 = pneg %p78
      $region18: #{tpu_custom_call.1} parent=5 // pred_check_branch
        %81 = sbr.rel (%p79) target = $region20
      $region19: #{tpu_custom_call.1} parent=5 // pred_region
        _
      $region20: #{tpu_custom_call.1} parent=5 // pred_fallthru
        _
      %p82 = scmp.le.s32.totalorder 1, %s9
      %p83 = scmp.lt.s32.totalorder %s9, 3
      %p84 = pnand %p82, %p83
      %p85 = pneg %p84
      // Predicated region
      $region21: #{tpu_custom_call.1} parent=5 // pred_check
        _
      $region22: #{tpu_custom_call.1} parent=5 // pred_check_branch
        %87 = sbr.rel (%p84) target = $region24
      $region23: #{tpu_custom_call.1} parent=5 // pred_region
        %s88 = ssub.s32 %s9, 1
        // Predicated region
        $region25: #{tpu_custom_call.1} parent=23 // pred_check
          %p89 = pneg %p30
        $region26: #{tpu_custom_call.1} parent=23 // pred_check_branch
          %91 = sbr.rel (%p89) target = $region28
        $region27: #{tpu_custom_call.1} parent=23 // pred_region
          %93 = dma.done [#allocation3], 128
        $region28: #{tpu_custom_call.1} parent=23 // pred_fallthru
          _
        %p94 = pneg %p30
        %p95 = pneg %p27
        %p96 = pneg %p51
        %p97 = pneg %p48
        %v98 = vld [vmem:[#allocation2] sm:$0xff]
        %v99 = vmul.f32 %v98, 2.0
        %100 = vst [vmem:[#allocation5] sm:$0xff] %v99
        // Predicated region
        $region29: #{tpu_custom_call.1} parent=23 // pred_check
          %p101 = pneg %p48
        $region30: #{tpu_custom_call.1} parent=23 // pred_check_branch
          %103 = sbr.rel (%p101) target = $region32
        $region31: #{tpu_custom_call.1} parent=23 // pred_region
          %105 = vsyncadd [#allocation4], 0
          %s107 = sshll.u32 [#allocation5], 4
          %s108 = int_to_ptr.vmem [resolvable:$true] %s107
          %s109 = sshll.u32 %s1, 4
          %s110 = int_to_ptr.hbm [resolvable:$true] %s109
          %112 = dma.vmem_to_hbm [thread:$0]  %s108, 128, %s110, [#allocation4]
        $region32: #{tpu_custom_call.1} parent=23 // pred_fallthru
          _
        // Predicated region
        $region33: #{tpu_custom_call.1} parent=23 // pred_check
          %p113 = pneg %p48
        $region34: #{tpu_custom_call.1} parent=23 // pred_check_branch
          %115 = sbr.rel (%p113) target = $region36
        $region35: #{tpu_custom_call.1} parent=23 // pred_region
          %117 = dma.done [#allocation4], 128
        $region36: #{tpu_custom_call.1} parent=23 // pred_fallthru
          _
      $region24: #{tpu_custom_call.1} parent=5 // pred_fallthru
        _
      %p118 = scmp.le.s32.totalorder 2, %s9
      // Predicated region
      $region37: #{tpu_custom_call.1} parent=5 // pred_check
        %p119 = pneg %p118
      $region38: #{tpu_custom_call.1} parent=5 // pred_check_branch
        %121 = sbr.rel (%p119) target = $region40
      $region39: #{tpu_custom_call.1} parent=5 // pred_region
        %s122 = ssub.s32 %s9, 2
      $region40: #{tpu_custom_call.1} parent=5 // pred_fallthru
        _
    $region6: #{tpu_custom_call.1} parent=1 // loop_footer
      %s13 = sadd.s32 1, %s9
    $region7: #{tpu_custom_call.1} parent=1 // loop_footer_branch
      %8 = sbr.rel target = $region3
    $region8: #{tpu_custom_call.1} parent=1 // loop_exit
      _
    %123 = vsyncpa [#allocation3], 1
    %s124 = scalar_lea.sflag [#allocation3], 1
    %125 = vsyncpa %s124, 1
    %126 = vsyncpa [#allocation4], 1
    %s127 = scalar_lea.sflag [#allocation4], 1
    %128 = vsyncpa %s127, 1

// kernel: _low_rank_linear_impl.1
$region0: #{_low_rank_linear_impl.1}
  #allocation0 [shape = 'u32[]', space=smem, size = 0x4, offset = 0x4, fixed_abs, tag = 'smem constant byte address 0x4 - core index']
  #allocation1 [shape = 'u32[72,128]{1,0:T(1,128)}', space=vmem, size = 0x9000, scoped, tag = 'internal scratch']
  #allocation2 [shape = 'f32[8,16]{1,0:T(8,128)}', space=vmem, size = 0x1000, scoped, tag = 'scratch operand']
  %s0 = inlined_call_operand.vmem [shape: f32[8,32], index: 0, kind: input, shape index: {}]
  %s1 = inlined_call_operand.vmem [shape: f32[32,16], index: 1, kind: input, shape index: {}]
  %s2 = inlined_call_operand.vmem [shape: f32[16,64], index: 2, kind: input, shape index: {}]
  %s3 = inlined_call_operand.vmem [shape: f32[1,64], index: 3, kind: input, shape index: {}]
  %s4 = inlined_call_operand.hbm [shape: f32[8,64], index: 4, kind: output, shape index: {}]
  %s5 = sld [smem:[#allocation0]]
  $region30: #{_low_rank_linear_impl.1} parent=0
    _
  %s7 = ssub.s32 1, %s5
  %s8 = scalar_select 0, %s7, %s5
  $region1: #{_low_rank_linear_impl.1} parent=0
    #allocation3 [shape = 'u8[4096]{0}', space=vmem, size = 0x1000, scoped, tag = 'output window, operand 0, single buffered']
    #allocation4 [shape = 's32[1]{0}', space=sflag, size = 0x4, scoped, tag = 'scoped memory for _low_rank_linear_impl.1']
    %9 = vsyncpa [#allocation4], 0
    // Predicated region
    $region2: #{_low_rank_linear_impl.1} parent=1 // pred_check
      _
    $region3: #{_low_rank_linear_impl.1} parent=1 // pred_check_branch
      %11 = sbr.rel (0) target = $region5
    $region4: #{_low_rank_linear_impl.1} parent=1 // pred_region
      _
    $region5: #{_low_rank_linear_impl.1} parent=1 // pred_fallthru
      _
    // Predicated region
    $region6: #{_low_rank_linear_impl.1} parent=1 // pred_check
      _
    $region7: #{_low_rank_linear_impl.1} parent=1 // pred_check_branch
      %13 = sbr.rel (0) target = $region9
    $region8: #{_low_rank_linear_impl.1} parent=1 // pred_region
      _
    $region9: #{_low_rank_linear_impl.1} parent=1 // pred_fallthru
      _
    // Predicated region
    $region10: #{_low_rank_linear_impl.1} parent=1 // pred_check
      _
    $region11: #{_low_rank_linear_impl.1} parent=1 // pred_check_branch
      %15 = sbr.rel (0) target = $region13
    $region12: #{_low_rank_linear_impl.1} parent=1 // pred_region
      _
    $region13: #{_low_rank_linear_impl.1} parent=1 // pred_fallthru
      _
    // Predicated region
    $region14: #{_low_rank_linear_impl.1} parent=1 // pred_check
      _
    $region15: #{_low_rank_linear_impl.1} parent=1 // pred_check_branch
      %17 = sbr.rel (0) target = $region17
    $region16: #{_low_rank_linear_impl.1} parent=1 // pred_region
      _
    $region17: #{_low_rank_linear_impl.1} parent=1 // pred_fallthru
      _
    %p18 = scmp.eq.s32.totalorder 0, 0
    // Predicated region
    $region18: #{_low_rank_linear_impl.1} parent=1 // pred_check
      %p19 = pneg %p18
    $region19: #{_low_rank_linear_impl.1} parent=1 // pred_check_branch
      %21 = sbr.rel (%p19) target = $region21
    $region20: #{_low_rank_linear_impl.1} parent=1 // pred_region
      %v22 = vld [vmem:[%s0] sm:$0xff]
      %v23 = vld [vmem:[%s1] sm:$0xff]
      %v24 = vld [vmem:[%s1 + $0x8] sm:$0xff]
      %v25 = vld [vmem:[%s1 + $0x10] sm:$0xff]
      %v26 = vld [vmem:[%s1 + $0x18] sm:$0xff]
      %vm27 = vcmask 261120
      %v29 = vsel %vm27, %v22, 0
      %31 = vmatpush.msra.mxu0 0.0
      %32 = vmatpush.msra.mxu0 0.0
      %33 = vmatpush.msra.mxu0 0.0
      %34 = vmatpush.msra.mxu0 0.0
      %35 = vmatpush.msra.mxu0 0.0
      %36 = vmatpush.msra.mxu0 0.0
      %37 = vmatpush.msra.mxu0 0.0
      %38 = vmatpush.msra.mxu0 0.0
      %39 = vmatpush.msra.mxu0 0.0
      %40 = vmatpush.msra.mxu0 0.0
      %41 = vmatpush.msra.mxu0 0.0
      %42 = vmatpush.msra.mxu0 0.0
      %43 = vmatpush.msra.mxu0 %v26
      %44 = vmatpush.msra.mxu0 %v25
      %45 = vmatpush.msra.mxu0 %v24
      %46 = vmatpush.msra.mxu0 %v23
      %47 = vmatmul.f32.gmra.mxu0 %v29
      %v48 = vpop.f32.mrf.mxu0
      %v49 = vadd.f32 0.0, %v48
      %50 = vdwg.mxu0
      %vm51 = vcmask 130048
      %52 = vst.msk [vmem:[#allocation2] sm:$0xff] %vm51, %v49
    $region21: #{_low_rank_linear_impl.1} parent=1 // pred_fallthru
      _
    %v53 = vld [vmem:[#allocation2] sm:$0xff]
    %v54 = vld [vmem:[%s2] sm:$0xff]
    %v55 = vld [vmem:[%s2 + $0x8] sm:$0xff]
    %v56 = vld [vmem:[%s3] sm:$0x1]
    %v58 = vperm.slane %v56, 0
    %vm60 = vcmask 130048
    %v62 = vsel %vm60, %v53, 0
    %64 = vmatpush.msra.mxu0 0.0
    %65 = vmatpush.msra.mxu0 0.0
    %66 = vmatpush.msra.mxu0 0.0
    %67 = vmatpush.msra.mxu0 0.0
    %68 = vmatpush.msra.mxu0 0.0
    %69 = vmatpush.msra.mxu0 0.0
    %70 = vmatpush.msra.mxu0 0.0
    %71 = vmatpush.msra.mxu0 0.0
    %72 = vmatpush.msra.mxu0 0.0
    %73 = vmatpush.msra.mxu0 0.0
    %74 = vmatpush.msra.mxu0 0.0
    %75 = vmatpush.msra.mxu0 0.0
    %76 = vmatpush.msra.mxu0 0.0
    %77 = vmatpush.msra.mxu0 0.0
    %78 = vmatpush.msra.mxu0 %v55
    %79 = vmatpush.msra.mxu0 %v54
    %80 = vmatmul.f32.gmra.mxu0 %v62
    %v81 = vpop.f32.mrf.mxu0
    %v82 = vadd.f32 %v58, %v81
    %83 = vdwg.mxu0
    %84 = vst [vmem:[#allocation3] sm:$0xff] %v82
    // Predicated region
    $region22: #{_low_rank_linear_impl.1} parent=1 // pred_check
      _
    $region23: #{_low_rank_linear_impl.1} parent=1 // pred_check_branch
      %86 = sbr.rel (0) target = $region25
    $region24: #{_low_rank_linear_impl.1} parent=1 // pred_region
      %88 = vsyncadd [#allocation4], 0
      %s90 = sshll.u32 [#allocation3], 4
      %s91 = int_to_ptr.vmem [resolvable:$true] %s90
      %s92 = sshll.u32 %s4, 4
      %s93 = int_to_ptr.hbm [resolvable:$true] %s92
      %95 = dma.vmem_to_hbm [thread:$0]  %s91, 128, %s93, [#allocation4]
    $region25: #{_low_rank_linear_impl.1} parent=1 // pred_fallthru
      _
    // Predicated region
    $region26: #{_low_rank_linear_impl.1} parent=1 // pred_check
      _
    $region27: #{_low_rank_linear_impl.1} parent=1 // pred_check_branch
      %97 = sbr.rel (0) target = $region29
    $region28: #{_low_rank_linear_impl.1} parent=1 // pred_region
      %99 = dma.done [#allocation4], 128
    $region29: #{_low_rank_linear_impl.1} parent=1 // pred_fallthru
      _
    %100 = vsyncpa [#allocation4], 1

</llo_original>
